<compile_context>
chip_gen: v5e
topology: v5e:2x2
jax: 0.10.0
libtpu: 0.0.40
codegen_flags: <defaults>
</compile_context>

<pallas_src>
import functools
import math

import jax
import jax.numpy as jnp
from jax.experimental import pallas as pl
from jax.experimental.pallas import tpu as pltpu


def _pick_tile_k(D, max_tile_k):
    """Largest multiple of 128 that divides D and is <= max_tile_k.

    If no such divisor exists, returns a 128-multiple tile together with a
    zero-padded contraction length (padding contributes nothing to the dot).
    """
    cap = max(128, (min(max_tile_k, max(D, 128)) // 128) * 128)
    if D % 128 == 0:
        for t in range(cap, 127, -128):
            if D % t == 0:
                return t, D
    d_pad = ((D + 127) // 128) * 128
    for t in range(cap, 127, -128):
        if d_pad % t == 0:
            return t, d_pad
    return 128, d_pad


def forest_kernel(x_ref, w_ref, o_ref):
    """One (B, tk) @ (tk, O) MXU pass per step; f32 accumulation in the
    resident output block across the K (reduction) grid axis."""
    @pl.when(pl.program_id(1) == 0)
    def _():
        o_ref[...] = jnp.zeros_like(o_ref)

    o_ref[...] += jnp.dot(x_ref[...], w_ref[...],
                          preferred_element_type=jnp.float32)


def prepare_forest_params(weights, biases, *, tile_k=6144):
    """Offline, once per model: collapse the forest into one linear model,
    zero-pad the contraction axis to the chosen tiling, cast to bf16.

    weights: (T, D, O), biases: (T, O)  ->  (w_pre (D_pad, O) bf16, b_mean (O,) f32)
    """
    T, D, O = weights.shape
    w_mean = jnp.mean(weights.astype(jnp.float32), axis=0)   # (D, O)
    b_mean = jnp.mean(biases.astype(jnp.float32), axis=0)    # (O,)
    _, d_pad = _pick_tile_k(D, tile_k)
    if d_pad != D:
        w_mean = jnp.pad(w_mean, ((0, d_pad - D), (0, 0)))
    return w_mean.astype(jnp.bfloat16), b_mean


@functools.partial(jax.jit, static_argnames=("tile_k",))
def random_forest_forward(x, w_pre, b_mean, *, tile_k=6144):
    """x: (B, C, H, W) NCHW; w_pre/b_mean from prepare_forest_params."""
    B = x.shape[0]
    D = math.prod(x.shape[1:])
    O = w_pre.shape[1]

    tk, d_pad = _pick_tile_k(D, tile_k)
    assert w_pre.shape[0] == d_pad, "w_pre prepared with a different tile_k"

    # Cheap per-call layout plumbing on the small activation only.
    x_flat = x.reshape(B, D).astype(jnp.bfloat16)
    if d_pad != D:
        x_flat = jnp.pad(x_flat, ((0, 0), (0, d_pad - D)))

    nk_total = d_pad // tk
    n_par = 2 if nk_total % 2 == 0 else 1   # 2-way megacore split when possible
    nk_per = nk_total // n_par

    partial = pl.pallas_call(
        forest_kernel,
        out_shape=jax.ShapeDtypeStruct((n_par, B, O), jnp.float32),
        grid_spec=pltpu.PrefetchScalarGridSpec(
            num_scalar_prefetch=0,
            grid=(n_par, nk_per),
            in_specs=[
                # activation K-tile
                pl.BlockSpec((B, tk), lambda p, k: (0, p * nk_per + k)),
                # collapsed-weight K-tile
                pl.BlockSpec((tk, O), lambda p, k: (p * nk_per + k, 0)),
            ],
            # Each parallel group owns a disjoint partial-sum block, resident
            # across the K axis (f32 accumulator, no scratch needed).
            out_specs=pl.BlockSpec((None, B, O), lambda p, k: (p, 0, 0)),
        ),
        compiler_params=pltpu.CompilerParams(
            dimension_semantics=("parallel", "arbitrary"),
            vmem_limit_bytes=32 * 1024 * 1024,
        ),
    )(x_flat, w_pre)

    # Trivial XLA epilogue: combine per-core partials and add the mean bias.
    # out = mean_t(x @ W_t + b_t) = x @ W_mean + b_mean
    return jnp.sum(partial, axis=0) + b_mean[None, :]


if __name__ == "__main__":
    key = jax.random.PRNGKey(0)
    B, C, H, W = 2, 4, 16, 16        # small NCHW stand-in for (1, 3, 224, 224)
    T, O = 8, 128                    # 8 trees, 128 outputs per tree
    D = C * H * W

    kx, kw, kb = jax.random.split(key, 3)
    x = 0.1 * jax.random.uniform(kx, (B, C, H, W), dtype=jnp.float32)
    weights = 0.02 * jax.random.normal(kw, (T, D, O), dtype=jnp.float32)
    biases = 0.01 * jax.random.normal(kb, (T, O), dtype=jnp.float32)

    # Pure-JAX f32 reference of the RandomForest forward (linear trees).
    x_flat = x.reshape(B, D)
    ref = jnp.mean(
        jnp.einsum("bd,tdo->tbo", x_flat, weights) + biases[:, None, :], axis=0
    )

    # Config 1: default tiling (single K tile at this toy size).
    w_pre, b_mean = prepare_forest_params(weights, biases)
    out = random_forest_forward(x, w_pre, b_mean)
    jax.block_until_ready(out)
    assert out.shape == (B, O)
    # Operands stream in bf16 (f32 accumulation), so compare with tolerance
    # above bf16 rounding.
    assert jnp.allclose(out, ref, atol=5e-3, rtol=1e-2), "mismatch (default tiling)"

    # Config 2: small K tiles -> exercises the K-reduction grid loop and the
    # 2-way parallel partial-sum split (megacore path on v7x).
    w_pre2, b_mean2 = prepare_forest_params(weights, biases, tile_k=256)
    out2 = random_forest_forward(x, w_pre2, b_mean2, tile_k=256)
    jax.block_until_ready(out2)
    assert out2.shape == (B, O)
    assert jnp.allclose(out2, ref, atol=5e-3, rtol=1e-2), "mismatch (tiled K)"

    print("KERNEL_OK")
</pallas_src>

<mosaic_0001>
module attributes {stable_mosaic.version = 11 : i64} {
  func.func @forest_kernel(%arg0: i32, %arg1: i32, %arg2: memref<2x1024xbf16, #tpu.memory_space<vmem>>, %arg3: memref<1024x128xbf16, #tpu.memory_space<vmem>>, %arg4: memref<1x2x128xf32, #tpu.memory_space<vmem>>) attributes {dimension_semantics = [#tpu.dimension_semantics<parallel>, #tpu.dimension_semantics<arbitrary>], iteration_bounds = array<i64: 1, 1>, scalar_prefetch = 0 : i64, scratch_operands = 0 : i64, tpu.core_type = #tpu.core_type<tc>, window_params = [{transform_indices = @transform_0, window_bounds = array<i64: 2, 1024>}, {transform_indices = @transform_1, window_bounds = array<i64: 1024, 128>}, {transform_indices = @transform_2, window_bounds = array<i64: 1, 2, 128>}]} {
    %c0_i32 = arith.constant 0 : i32
    %0 = arith.cmpi eq, %arg1, %c0_i32 : i32
    %1 = arith.extui %0 : i1 to i32
    %c0_i32_0 = arith.constant 0 : i32
    %2 = arith.cmpi ne, %1, %c0_i32_0 : i32
    scf.if %2 {
      %cst_10 = arith.constant 0.000000e+00 : f32
      %12 = vector.broadcast %cst_10 : f32 to vector<2x128xf32>
      %c0_11 = arith.constant 0 : index
      %c0_12 = arith.constant 0 : index
      %c0_13 = arith.constant 0 : index
      %13 = vector.load %arg4[%c0_11, %c0_12, %c0_13] : memref<1x2x128xf32, #tpu.memory_space<vmem>>, vector<1x2x128xf32>
      %14 = vector.shape_cast %13 : vector<1x2x128xf32> to vector<2x128xf32>
      %15 = vector.shape_cast %12 : vector<2x128xf32> to vector<1x2x128xf32>
      tpu.vector_store %arg4[%c0_11, %c0_12, %c0_13], %15 {strides = array<i32>} : memref<1x2x128xf32, #tpu.memory_space<vmem>>, vector<1x2x128xf32>,
    } else {
    }
    %c0 = arith.constant 0 : index
    %c0_1 = arith.constant 0 : index
    %c0_2 = arith.constant 0 : index
    %3 = vector.load %arg4[%c0, %c0_1, %c0_2] : memref<1x2x128xf32, #tpu.memory_space<vmem>>, vector<1x2x128xf32>
    %4 = vector.shape_cast %3 : vector<1x2x128xf32> to vector<2x128xf32>
    %c0_3 = arith.constant 0 : index
    %c0_4 = arith.constant 0 : index
    %5 = vector.load %arg2[%c0_3, %c0_4] : memref<2x1024xbf16, #tpu.memory_space<vmem>>, vector<2x1024xbf16>
    %c0_5 = arith.constant 0 : index
    %c0_6 = arith.constant 0 : index
    %6 = vector.load %arg3[%c0_5, %c0_6] : memref<1024x128xbf16, #tpu.memory_space<vmem>>, vector<1024x128xbf16>
    %cst = arith.constant dense<0.000000e+00> : vector<2x128xf32>
    %7 = tpu.matmul %5, %6, %cst {dimension_numbers = #tpu.dot_dimension_numbers<[1], [0], [0], [1], [0, 0, 1, 1], [], []>} : vector<2x1024xbf16>, vector<1024x128xbf16>, vector<2x128xf32> -> vector<2x128xf32>
    %8 = arith.addf %4, %7 : vector<2x128xf32>
    %c0_7 = arith.constant 0 : index
    %c0_8 = arith.constant 0 : index
    %c0_9 = arith.constant 0 : index
    %9 = vector.load %arg4[%c0_7, %c0_8, %c0_9] : memref<1x2x128xf32, #tpu.memory_space<vmem>>, vector<1x2x128xf32>
    %10 = vector.shape_cast %9 : vector<1x2x128xf32> to vector<2x128xf32>
    %11 = vector.shape_cast %8 : vector<2x128xf32> to vector<1x2x128xf32>
    tpu.vector_store %arg4[%c0_7, %c0_8, %c0_9], %11 {strides = array<i32>} : memref<1x2x128xf32, #tpu.memory_space<vmem>>, vector<1x2x128xf32>,
    return
  }
  func.func @transform_0(%arg0: i32, %arg1: i32) -> (i32, i32) {
    %c1_i32 = arith.constant 1 : i32
    %0 = arith.muli %arg0, %c1_i32 : i32
    %1 = arith.addi %0, %arg1 : i32
    %c0_i32 = arith.constant 0 : i32
    %c0_i32_0 = arith.constant 0 : i32
    return %c0_i32, %1 : i32, i32
  }
  func.func @transform_1(%arg0: i32, %arg1: i32) -> (i32, i32) {
    %c1_i32 = arith.constant 1 : i32
    %0 = arith.muli %arg0, %c1_i32 : i32
    %1 = arith.addi %0, %arg1 : i32
    %c0_i32 = arith.constant 0 : i32
    %c0_i32_0 = arith.constant 0 : i32
    return %1, %c0_i32 : i32, i32
  }
  func.func @transform_2(%arg0: i32, %arg1: i32) -> (i32, i32, i32) {
    %c0_i32 = arith.constant 0 : i32
    %c0_i32_0 = arith.constant 0 : i32
    %c0_i32_1 = arith.constant 0 : i32
    return %arg0, %c0_i32, %c0_i32_0 : i32, i32, i32
  }
}

</mosaic_0001>

<llo_original>
// kernel: random_forest_forward.1
$region0: #{random_forest_forward.1}
  #allocation0 [shape = 'u32[]', space=smem, size = 0x4, offset = 0x4, fixed_abs, tag = 'smem constant byte address 0x4 - core index']
  #allocation1 [shape = 'u32[72,128]{1,0:T(1,128)}', space=vmem, size = 0x9000, scoped, tag = 'internal scratch']
  %s0 = inlined_call_operand.vmem [shape: bf16[2,1024], index: 0, kind: input, shape index: {}]
  %s1 = inlined_call_operand.hbm [shape: bf16[1024,128], index: 1, kind: input, shape index: {}]
  %s2 = inlined_call_operand.vmem [shape: f32[1,2,128], index: 2, kind: output, shape index: {}]
  %s3 = sld [smem:[#allocation0]]
  $region26: #{random_forest_forward.1} parent=0
    _
  %s5 = ssub.s32 1, %s3
  %s6 = scalar_select 0, %s5, %s3
  $region1: #{random_forest_forward.1} parent=0
    #allocation2 [shape = 'u8[262144]{0}', space=vmem, size = 0x40000, scoped, tag = 'input window, operand 1, single buffered']
    #allocation3 [shape = 's32[1]{0}', space=sflag, size = 0x4, scoped, tag = 'scoped memory for random_forest_forward.1']
    %7 = vsyncpa [#allocation3], 0
    // Predicated region
    $region2: #{random_forest_forward.1} parent=1 // pred_check
      _
    $region3: #{random_forest_forward.1} parent=1 // pred_check_branch
      %9 = sbr.rel (0) target = $region5
    $region4: #{random_forest_forward.1} parent=1 // pred_region
      %s10 = sadd.s32 0, 0
      %s11 = smul.u32 8, %s10
      %p12 = scmp.lt.s32.totalorder %s11, 7
      %s13 = scalar_select %p12, %s11, 7
      %s14 = scalar_lea.vmem %s0, %s13
      %s15 = sadd.s32 0, 0
      %s16 = smul.u32 8, %s15
    $region5: #{random_forest_forward.1} parent=1 // pred_fallthru
      _
    // Predicated region
    $region6: #{random_forest_forward.1} parent=1 // pred_check
      _
    $region7: #{random_forest_forward.1} parent=1 // pred_check_branch
      %18 = sbr.rel (0) target = $region9
    $region8: #{random_forest_forward.1} parent=1 // pred_region
      %s19 = sadd.s32 0, 0
      %s20 = smul.u32 128, %s19
      %22 = vsyncadd [#allocation3], 0
      %s23 = smul.addr %s20, 4
      %s24 = scalar_lea.hbm %s1, %s23
      %s25 = sshll.u32 %s24, 4
      %s26 = int_to_ptr.hbm [resolvable:$true] %s25
      %s27 = sshll.u32 [#allocation2], 4
      %s28 = int_to_ptr.vmem [resolvable:$true] %s27
      %33 = dma.hbm_to_vmem [thread:$0]  %s26, 8192, %s28, [#allocation3], 64, 64, 4
    $region9: #{random_forest_forward.1} parent=1 // pred_fallthru
      _
    // Predicated region
    $region10: #{random_forest_forward.1} parent=1 // pred_check
      _
    $region11: #{random_forest_forward.1} parent=1 // pred_check_branch
      %35 = sbr.rel (0) target = $region13
    $region12: #{random_forest_forward.1} parent=1 // pred_region
      %37 = dma.done [#allocation3], 8192
    $region13: #{random_forest_forward.1} parent=1 // pred_fallthru
      _
    %s38 = sadd.s32 0, 0
    %s39 = smul.u32 8, %s38
    %p40 = scmp.lt.s32.totalorder %s39, 7
    %s41 = scalar_select %p40, %s39, 7
    %s42 = scalar_lea.vmem %s0, %s41
    %s43 = sadd.s32 0, 0
    %s44 = smul.u32 8, %s43
    %p45 = scmp.lt.s32.totalorder %s44, 7
    %s46 = scalar_select %p45, %s44, 7
    %s47 = scalar_lea.vmem %s0, %s46
    %s48 = sadd.s32 0, 0
    %s49 = smul.u32 8, %s48
    %s50 = sadd.s32 0, 0
    %s51 = smul.u32 128, %s50
    %p52 = scmp.eq.s32.totalorder 0, 0
    // Predicated region
    $region14: #{random_forest_forward.1} parent=1 // pred_check
      %p53 = pneg %p52
    $region15: #{random_forest_forward.1} parent=1 // pred_check_branch
      %55 = sbr.rel (%p53) target = $region17
    $region16: #{random_forest_forward.1} parent=1 // pred_region
      %56 = vst [vmem:[%s2] sm:$0x3] 0.0
    $region17: #{random_forest_forward.1} parent=1 // pred_fallthru
      _
    %v57 = vld [vmem:[%s2] sm:$0x3]
    %v58 = vld [vmem:[%s47] sm:$0xff]
    %v59 = vld [vmem:[#allocation2] sm:$0xf]
    %v60 = vld [vmem:[#allocation2 + $0x4] sm:$0xf]
    %v61 = vld [vmem:[#allocation2 + $0x8] sm:$0xf]
    %v62 = vld [vmem:[#allocation2 + $0xc] sm:$0xf]
    %v63 = vld [vmem:[#allocation2 + $0x10] sm:$0xf]
    %v64 = vld [vmem:[#allocation2 + $0x14] sm:$0xf]
    %v65 = vld [vmem:[#allocation2 + $0x18] sm:$0xf]
    %v66 = vld [vmem:[#allocation2 + $0x1c] sm:$0xf]
    %v67 = vld [vmem:[#allocation2 + $0x20] sm:$0xf]
    %v68 = vld [vmem:[#allocation2 + $0x24] sm:$0xf]
    %v69 = vld [vmem:[#allocation2 + $0x28] sm:$0xf]
    %v70 = vld [vmem:[#allocation2 + $0x2c] sm:$0xf]
    %v71 = vld [vmem:[#allocation2 + $0x30] sm:$0xf]
    %v72 = vld [vmem:[#allocation2 + $0x34] sm:$0xf]
    %v73 = vld [vmem:[#allocation2 + $0x38] sm:$0xf]
    %v74 = vld [vmem:[#allocation2 + $0x3c] sm:$0xf]
    %v75 = vld [vmem:[#allocation2 + $0x40] sm:$0xf]
    %v76 = vld [vmem:[#allocation2 + $0x44] sm:$0xf]
    %v77 = vld [vmem:[#allocation2 + $0x48] sm:$0xf]
    %v78 = vld [vmem:[#allocation2 + $0x4c] sm:$0xf]
    %v79 = vld [vmem:[#allocation2 + $0x50] sm:$0xf]
    %v80 = vld [vmem:[#allocation2 + $0x54] sm:$0xf]
    %v81 = vld [vmem:[#allocation2 + $0x58] sm:$0xf]
    %v82 = vld [vmem:[#allocation2 + $0x5c] sm:$0xf]
    %v83 = vld [vmem:[#allocation2 + $0x60] sm:$0xf]
    %v84 = vld [vmem:[#allocation2 + $0x64] sm:$0xf]
    %v85 = vld [vmem:[#allocation2 + $0x68] sm:$0xf]
    %v86 = vld [vmem:[#allocation2 + $0x6c] sm:$0xf]
    %v87 = vld [vmem:[#allocation2 + $0x70] sm:$0xf]
    %v88 = vld [vmem:[#allocation2 + $0x74] sm:$0xf]
    %v89 = vld [vmem:[#allocation2 + $0x78] sm:$0xf]
    %v90 = vld [vmem:[#allocation2 + $0x7c] sm:$0xf]
    %v91 = vld [vmem:[#allocation2 + $0x80] sm:$0xf]
    %v92 = vld [vmem:[#allocation2 + $0x84] sm:$0xf]
    %v93 = vld [vmem:[#allocation2 + $0x88] sm:$0xf]
    %v94 = vld [vmem:[#allocation2 + $0x8c] sm:$0xf]
    %v95 = vld [vmem:[#allocation2 + $0x90] sm:$0xf]
    %v96 = vld [vmem:[#allocation2 + $0x94] sm:$0xf]
    %v97 = vld [vmem:[#allocation2 + $0x98] sm:$0xf]
    %v98 = vld [vmem:[#allocation2 + $0x9c] sm:$0xf]
    %v99 = vld [vmem:[#allocation2 + $0xa0] sm:$0xf]
    %v100 = vld [vmem:[#allocation2 + $0xa4] sm:$0xf]
    %v101 = vld [vmem:[#allocation2 + $0xa8] sm:$0xf]
    %v102 = vld [vmem:[#allocation2 + $0xac] sm:$0xf]
    %v103 = vld [vmem:[#allocation2 + $0xb0] sm:$0xf]
    %v104 = vld [vmem:[#allocation2 + $0xb4] sm:$0xf]
    %v105 = vld [vmem:[#allocation2 + $0xb8] sm:$0xf]
    %v106 = vld [vmem:[#allocation2 + $0xbc] sm:$0xf]
    %v107 = vld [vmem:[#allocation2 + $0xc0] sm:$0xf]
    %v108 = vld [vmem:[#allocation2 + $0xc4] sm:$0xf]
    %v109 = vld [vmem:[#allocation2 + $0xc8] sm:$0xf]
    %v110 = vld [vmem:[#allocation2 + $0xcc] sm:$0xf]
    %v111 = vld [vmem:[#allocation2 + $0xd0] sm:$0xf]
    %v112 = vld [vmem:[#allocation2 + $0xd4] sm:$0xf]
    %v113 = vld [vmem:[#allocation2 + $0xd8] sm:$0xf]
    %v114 = vld [vmem:[#allocation2 + $0xdc] sm:$0xf]
    %v115 = vld [vmem:[#allocation2 + $0xe0] sm:$0xf]
    %v116 = vld [vmem:[#allocation2 + $0xe4] sm:$0xf]
    %v117 = vld [vmem:[#allocation2 + $0xe8] sm:$0xf]
    %v118 = vld [vmem:[#allocation2 + $0xec] sm:$0xf]
    %v119 = vld [vmem:[#allocation2 + $0xf0] sm:$0xf]
    %v120 = vld [vmem:[#allocation2 + $0xf4] sm:$0xf]
    %v121 = vld [vmem:[#allocation2 + $0xf8] sm:$0xf]
    %v122 = vld [vmem:[#allocation2 + $0xfc] sm:$0xf]
    %v123 = vld [vmem:[#allocation2 + $0x100] sm:$0xf]
    %v124 = vld [vmem:[#allocation2 + $0x104] sm:$0xf]
    %v125 = vld [vmem:[#allocation2 + $0x108] sm:$0xf]
    %v126 = vld [vmem:[#allocation2 + $0x10c] sm:$0xf]
    %v127 = vld [vmem:[#allocation2 + $0x110] sm:$0xf]
    %v128 = vld [vmem:[#allocation2 + $0x114] sm:$0xf]
    %v129 = vld [vmem:[#allocation2 + $0x118] sm:$0xf]
    %v130 = vld [vmem:[#allocation2 + $0x11c] sm:$0xf]
    %v131 = vld [vmem:[#allocation2 + $0x120] sm:$0xf]
    %v132 = vld [vmem:[#allocation2 + $0x124] sm:$0xf]
    %v133 = vld [vmem:[#allocation2 + $0x128] sm:$0xf]
    %v134 = vld [vmem:[#allocation2 + $0x12c] sm:$0xf]
    %v135 = vld [vmem:[#allocation2 + $0x130] sm:$0xf]
    %v136 = vld [vmem:[#allocation2 + $0x134] sm:$0xf]
    %v137 = vld [vmem:[#allocation2 + $0x138] sm:$0xf]
    %v138 = vld [vmem:[#allocation2 + $0x13c] sm:$0xf]
    %v139 = vld [vmem:[#allocation2 + $0x140] sm:$0xf]
    %v140 = vld [vmem:[#allocation2 + $0x144] sm:$0xf]
    %v141 = vld [vmem:[#allocation2 + $0x148] sm:$0xf]
    %v142 = vld [vmem:[#allocation2 + $0x14c] sm:$0xf]
    %v143 = vld [vmem:[#allocation2 + $0x150] sm:$0xf]
    %v144 = vld [vmem:[#allocation2 + $0x154] sm:$0xf]
    %v145 = vld [vmem:[#allocation2 + $0x158] sm:$0xf]
    %v146 = vld [vmem:[#allocation2 + $0x15c] sm:$0xf]
    %v147 = vld [vmem:[#allocation2 + $0x160] sm:$0xf]
    %v148 = vld [vmem:[#allocation2 + $0x164] sm:$0xf]
    %v149 = vld [vmem:[#allocation2 + $0x168] sm:$0xf]
    %v150 = vld [vmem:[#allocation2 + $0x16c] sm:$0xf]
    %v151 = vld [vmem:[#allocation2 + $0x170] sm:$0xf]
    %v152 = vld [vmem:[#allocation2 + $0x174] sm:$0xf]
    %v153 = vld [vmem:[#allocation2 + $0x178] sm:$0xf]
    %v154 = vld [vmem:[#allocation2 + $0x17c] sm:$0xf]
    %v155 = vld [vmem:[#allocation2 + $0x180] sm:$0xf]
    %v156 = vld [vmem:[#allocation2 + $0x184] sm:$0xf]
    %v157 = vld [vmem:[#allocation2 + $0x188] sm:$0xf]
    %v158 = vld [vmem:[#allocation2 + $0x18c] sm:$0xf]
    %v159 = vld [vmem:[#allocation2 + $0x190] sm:$0xf]
    %v160 = vld [vmem:[#allocation2 + $0x194] sm:$0xf]
    %v161 = vld [vmem:[#allocation2 + $0x198] sm:$0xf]
    %v162 = vld [vmem:[#allocation2 + $0x19c] sm:$0xf]
    %v163 = vld [vmem:[#allocation2 + $0x1a0] sm:$0xf]
    %v164 = vld [vmem:[#allocation2 + $0x1a4] sm:$0xf]
    %v165 = vld [vmem:[#allocation2 + $0x1a8] sm:$0xf]
    %v166 = vld [vmem:[#allocation2 + $0x1ac] sm:$0xf]
    %v167 = vld [vmem:[#allocation2 + $0x1b0] sm:$0xf]
    %v168 = vld [vmem:[#allocation2 + $0x1b4] sm:$0xf]
    %v169 = vld [vmem:[#allocation2 + $0x1b8] sm:$0xf]
    %v170 = vld [vmem:[#allocation2 + $0x1bc] sm:$0xf]
    %v171 = vld [vmem:[#allocation2 + $0x1c0] sm:$0xf]
    %v172 = vld [vmem:[#allocation2 + $0x1c4] sm:$0xf]
    %v173 = vld [vmem:[#allocation2 + $0x1c8] sm:$0xf]
    %v174 = vld [vmem:[#allocation2 + $0x1cc] sm:$0xf]
    %v175 = vld [vmem:[#allocation2 + $0x1d0] sm:$0xf]
    %v176 = vld [vmem:[#allocation2 + $0x1d4] sm:$0xf]
    %v177 = vld [vmem:[#allocation2 + $0x1d8] sm:$0xf]
    %v178 = vld [vmem:[#allocation2 + $0x1dc] sm:$0xf]
    %v179 = vld [vmem:[#allocation2 + $0x1e0] sm:$0xf]
    %v180 = vld [vmem:[#allocation2 + $0x1e4] sm:$0xf]
    %v181 = vld [vmem:[#allocation2 + $0x1e8] sm:$0xf]
    %v182 = vld [vmem:[#allocation2 + $0x1ec] sm:$0xf]
    %v183 = vld [vmem:[#allocation2 + $0x1f0] sm:$0xf]
    %v184 = vld [vmem:[#allocation2 + $0x1f4] sm:$0xf]
    %v185 = vld [vmem:[#allocation2 + $0x1f8] sm:$0xf]
    %v186 = vld [vmem:[#allocation2 + $0x1fc] sm:$0xf]
    %188 = vst [vmem:[#allocation1] ss:$9 sm:$0xff] %v58
    %v189 = vld [vmem:[#allocation1] sm:$0xff]
    %v190 = vld [vmem:[#allocation1 + $0x9] sm:$0xff]
    %v191 = vld [vmem:[#allocation1 + $0x12] sm:$0xff]
    %v192 = vld [vmem:[#allocation1 + $0x1b] sm:$0xff]
    %v193 = vld [vmem:[#allocation1 + $0x24] sm:$0xff]
    %v194 = vld [vmem:[#allocation1 + $0x2d] sm:$0xff]
    %v195 = vld [vmem:[#allocation1 + $0x36] sm:$0xff]
    %v196 = vld [vmem:[#allocation1 + $0x3f] sm:$0xff]
    %v333 = vunpack.c.l.b16 %v59
    %v334 = vunpack.c.l.b16 %v60
    %v335 = vunpack.c.l.b16 %v61
    %v336 = vunpack.c.l.b16 %v62
    %v337 = vunpack.c.l.b16 %v63
    %v338 = vunpack.c.l.b16 %v64
    %v339 = vunpack.c.l.b16 %v65
    %v340 = vunpack.c.l.b16 %v66
    %v341 = vunpack.c.l.b16 %v67
    %v342 = vunpack.c.l.b16 %v68
    %v343 = vunpack.c.l.b16 %v69
    %v344 = vunpack.c.l.b16 %v70
    %v345 = vunpack.c.l.b16 %v71
    %v346 = vunpack.c.l.b16 %v72
    %v347 = vunpack.c.l.b16 %v73
    %v348 = vunpack.c.l.b16 %v74
    %v349 = vunpack.c.l.b16 %v75
    %v350 = vunpack.c.l.b16 %v76
    %v351 = vunpack.c.l.b16 %v77
    %v352 = vunpack.c.l.b16 %v78
    %v353 = vunpack.c.l.b16 %v79
    %v354 = vunpack.c.l.b16 %v80
    %v355 = vunpack.c.l.b16 %v81
    %v356 = vunpack.c.l.b16 %v82
    %v357 = vunpack.c.l.b16 %v83
    %v358 = vunpack.c.l.b16 %v84
    %v359 = vunpack.c.l.b16 %v85
    %v360 = vunpack.c.l.b16 %v86
    %v361 = vunpack.c.l.b16 %v87
    %v362 = vunpack.c.l.b16 %v88
    %v363 = vunpack.c.l.b16 %v89
    %v364 = vunpack.c.l.b16 %v90
    %v365 = vunpack.c.l.b16 %v91
    %v366 = vunpack.c.l.b16 %v92
    %v367 = vunpack.c.l.b16 %v93
    %v368 = vunpack.c.l.b16 %v94
    %v369 = vunpack.c.l.b16 %v95
    %v370 = vunpack.c.l.b16 %v96
    %v371 = vunpack.c.l.b16 %v97
    %v372 = vunpack.c.l.b16 %v98
    %v373 = vunpack.c.l.b16 %v99
    %v374 = vunpack.c.l.b16 %v100
    %v375 = vunpack.c.l.b16 %v101
    %v376 = vunpack.c.l.b16 %v102
    %v377 = vunpack.c.l.b16 %v103
    %v378 = vunpack.c.l.b16 %v104
    %v379 = vunpack.c.l.b16 %v105
    %v380 = vunpack.c.l.b16 %v106
    %v381 = vunpack.c.l.b16 %v107
    %v382 = vunpack.c.l.b16 %v108
    %v383 = vunpack.c.l.b16 %v109
    %v384 = vunpack.c.l.b16 %v110
    %v385 = vunpack.c.l.b16 %v111
    %v386 = vunpack.c.l.b16 %v112
    %v387 = vunpack.c.l.b16 %v113
    %v388 = vunpack.c.l.b16 %v114
    %v389 = vunpack.c.l.b16 %v115
    %v390 = vunpack.c.l.b16 %v116
    %v391 = vunpack.c.l.b16 %v117
    %v392 = vunpack.c.l.b16 %v118
    %v393 = vunpack.c.l.b16 %v119
    %v394 = vunpack.c.l.b16 %v120
    %v395 = vunpack.c.l.b16 %v121
    %v396 = vunpack.c.l.b16 %v122
    %v397 = vunpack.c.l.b16 %v123
    %v398 = vunpack.c.l.b16 %v124
    %v399 = vunpack.c.l.b16 %v125
    %v400 = vunpack.c.l.b16 %v126
    %v401 = vunpack.c.l.b16 %v127
    %v402 = vunpack.c.l.b16 %v128
    %v403 = vunpack.c.l.b16 %v129
    %v404 = vunpack.c.l.b16 %v130
    %v405 = vunpack.c.l.b16 %v131
    %v406 = vunpack.c.l.b16 %v132
    %v407 = vunpack.c.l.b16 %v133
    %v408 = vunpack.c.l.b16 %v134
    %v409 = vunpack.c.l.b16 %v135
    %v410 = vunpack.c.l.b16 %v136
    %v411 = vunpack.c.l.b16 %v137
    %v412 = vunpack.c.l.b16 %v138
    %v413 = vunpack.c.l.b16 %v139
    %v414 = vunpack.c.l.b16 %v140
    %v415 = vunpack.c.l.b16 %v141
    %v416 = vunpack.c.l.b16 %v142
    %v417 = vunpack.c.l.b16 %v143
    %v418 = vunpack.c.l.b16 %v144
    %v419 = vunpack.c.l.b16 %v145
    %v420 = vunpack.c.l.b16 %v146
    %v421 = vunpack.c.l.b16 %v147
    %v422 = vunpack.c.l.b16 %v148
    %v423 = vunpack.c.l.b16 %v149
    %v424 = vunpack.c.l.b16 %v150
    %v425 = vunpack.c.l.b16 %v151
    %v426 = vunpack.c.l.b16 %v152
    %v427 = vunpack.c.l.b16 %v153
    %v428 = vunpack.c.l.b16 %v154
    %v429 = vunpack.c.l.b16 %v155
    %v430 = vunpack.c.l.b16 %v156
    %v431 = vunpack.c.l.b16 %v157
    %v432 = vunpack.c.l.b16 %v158
    %v433 = vunpack.c.l.b16 %v159
    %v434 = vunpack.c.l.b16 %v160
    %v435 = vunpack.c.l.b16 %v161
    %v436 = vunpack.c.l.b16 %v162
    %v437 = vunpack.c.l.b16 %v163
    %v438 = vunpack.c.l.b16 %v164
    %v439 = vunpack.c.l.b16 %v165
    %v440 = vunpack.c.l.b16 %v166
    %v441 = vunpack.c.l.b16 %v167
    %v442 = vunpack.c.l.b16 %v168
    %v443 = vunpack.c.l.b16 %v169
    %v444 = vunpack.c.l.b16 %v170
    %v445 = vunpack.c.l.b16 %v171
    %v446 = vunpack.c.l.b16 %v172
    %v447 = vunpack.c.l.b16 %v173
    %v448 = vunpack.c.l.b16 %v174
    %v449 = vunpack.c.l.b16 %v175
    %v450 = vunpack.c.l.b16 %v176
    %v451 = vunpack.c.l.b16 %v177
    %v452 = vunpack.c.l.b16 %v178
    %v453 = vunpack.c.l.b16 %v179
    %v454 = vunpack.c.l.b16 %v180
    %v455 = vunpack.c.l.b16 %v181
    %v456 = vunpack.c.l.b16 %v182
    %v457 = vunpack.c.l.b16 %v183
    %v458 = vunpack.c.l.b16 %v184
    %v459 = vunpack.c.l.b16 %v185
    %v460 = vunpack.c.l.b16 %v186
    %v461 = vpack.c.b16 %v334, %v333
    %v462 = vpack.c.b16 %v336, %v335
    %v463 = vpack.c.b16 %v338, %v337
    %v464 = vpack.c.b16 %v340, %v339
    %v465 = vpack.c.b16 %v342, %v341
    %v466 = vpack.c.b16 %v344, %v343
    %v467 = vpack.c.b16 %v346, %v345
    %v468 = vpack.c.b16 %v348, %v347
    %v469 = vpack.c.b16 %v350, %v349
    %v470 = vpack.c.b16 %v352, %v351
    %v471 = vpack.c.b16 %v354, %v353
    %v472 = vpack.c.b16 %v356, %v355
    %v473 = vpack.c.b16 %v358, %v357
    %v474 = vpack.c.b16 %v360, %v359
    %v475 = vpack.c.b16 %v362, %v361
    %v476 = vpack.c.b16 %v364, %v363
    %v477 = vpack.c.b16 %v366, %v365
    %v478 = vpack.c.b16 %v368, %v367
    %v479 = vpack.c.b16 %v370, %v369
    %v480 = vpack.c.b16 %v372, %v371
    %v481 = vpack.c.b16 %v374, %v373
    %v482 = vpack.c.b16 %v376, %v375
    %v483 = vpack.c.b16 %v378, %v377
    %v484 = vpack.c.b16 %v380, %v379
    %v485 = vpack.c.b16 %v382, %v381
    %v486 = vpack.c.b16 %v384, %v383
    %v487 = vpack.c.b16 %v386, %v385
    %v488 = vpack.c.b16 %v388, %v387
    %v489 = vpack.c.b16 %v390, %v389
    %v490 = vpack.c.b16 %v392, %v391
    %v491 = vpack.c.b16 %v394, %v393
    %v492 = vpack.c.b16 %v396, %v395
    %v493 = vpack.c.b16 %v398, %v397
    %v494 = vpack.c.b16 %v400, %v399
    %v495 = vpack.c.b16 %v402, %v401
    %v496 = vpack.c.b16 %v404, %v403
    %v497 = vpack.c.b16 %v406, %v405
    %v498 = vpack.c.b16 %v408, %v407
    %v499 = vpack.c.b16 %v410, %v409
    %v500 = vpack.c.b16 %v412, %v411
    %v501 = vpack.c.b16 %v414, %v413
    %v502 = vpack.c.b16 %v416, %v415
    %v503 = vpack.c.b16 %v418, %v417
    %v504 = vpack.c.b16 %v420, %v419
    %v505 = vpack.c.b16 %v422, %v421
    %v506 = vpack.c.b16 %v424, %v423
    %v507 = vpack.c.b16 %v426, %v425
    %v508 = vpack.c.b16 %v428, %v427
    %v509 = vpack.c.b16 %v430, %v429
    %v510 = vpack.c.b16 %v432, %v431
    %v511 = vpack.c.b16 %v434, %v433
    %v512 = vpack.c.b16 %v436, %v435
    %v513 = vpack.c.b16 %v438, %v437
    %v514 = vpack.c.b16 %v440, %v439
    %v515 = vpack.c.b16 %v442, %v441
    %v516 = vpack.c.b16 %v444, %v443
    %v517 = vpack.c.b16 %v446, %v445
    %v518 = vpack.c.b16 %v448, %v447
    %v519 = vpack.c.b16 %v450, %v449
    %v520 = vpack.c.b16 %v452, %v451
    %v521 = vpack.c.b16 %v454, %v453
    %v522 = vpack.c.b16 %v456, %v455
    %v523 = vpack.c.b16 %v458, %v457
    %v524 = vpack.c.b16 %v460, %v459
    %589 = vmatpush.bf16.msra.mxu0 %v468
    %590 = vmatpush.bf16.msra.mxu0 %v467
    %591 = vmatpush.bf16.msra.mxu0 %v466
    %592 = vmatpush.bf16.msra.mxu0 %v465
    %593 = vmatpush.bf16.msra.mxu0 %v464
    %594 = vmatpush.bf16.msra.mxu0 %v463
    %595 = vmatpush.bf16.msra.mxu0 %v462
    %596 = vmatpush.bf16.msra.mxu0 %v461
    %597 = vmatmul.bf16.gmra.mxu0 %v189
    %v598 = vpop.f32.mrf.mxu0
    %v599 = vadd.f32 0.0, %v598
    %v600 = vpop.f32.mrf.mxu0
    %601 = vdwg.mxu0
    %602 = vmatpush.bf16.msra.mxu0 %v476
    %603 = vmatpush.bf16.msra.mxu0 %v475
    %604 = vmatpush.bf16.msra.mxu0 %v474
    %605 = vmatpush.bf16.msra.mxu0 %v473
    %606 = vmatpush.bf16.msra.mxu0 %v472
    %607 = vmatpush.bf16.msra.mxu0 %v471
    %608 = vmatpush.bf16.msra.mxu0 %v470
    %609 = vmatpush.bf16.msra.mxu0 %v469
    %610 = vmatmul.bf16.gmra.mxu0 %v190
    %v611 = vpop.f32.mrf.mxu0
    %v612 = vadd.f32 %v599, %v611
    %v613 = vpop.f32.mrf.mxu0
    %614 = vdwg.mxu0
    %615 = vmatpush.bf16.msra.mxu0 %v484
    %616 = vmatpush.bf16.msra.mxu0 %v483
    %617 = vmatpush.bf16.msra.mxu0 %v482
    %618 = vmatpush.bf16.msra.mxu0 %v481
    %619 = vmatpush.bf16.msra.mxu0 %v480
    %620 = vmatpush.bf16.msra.mxu0 %v479
    %621 = vmatpush.bf16.msra.mxu0 %v478
    %622 = vmatpush.bf16.msra.mxu0 %v477
    %623 = vmatmul.bf16.gmra.mxu0 %v191
    %v624 = vpop.f32.mrf.mxu0
    %v625 = vadd.f32 %v612, %v624
    %v626 = vpop.f32.mrf.mxu0
    %627 = vdwg.mxu0
    %628 = vmatpush.bf16.msra.mxu0 %v492
    %629 = vmatpush.bf16.msra.mxu0 %v491
    %630 = vmatpush.bf16.msra.mxu0 %v490
    %631 = vmatpush.bf16.msra.mxu0 %v489
    %632 = vmatpush.bf16.msra.mxu0 %v488
    %633 = vmatpush.bf16.msra.mxu0 %v487
    %634 = vmatpush.bf16.msra.mxu0 %v486
    %635 = vmatpush.bf16.msra.mxu0 %v485
    %636 = vmatmul.bf16.gmra.mxu0 %v192
    %v637 = vpop.f32.mrf.mxu0
    %v638 = vadd.f32 %v625, %v637
    %v639 = vpop.f32.mrf.mxu0
    %640 = vdwg.mxu0
    %641 = vmatpush.bf16.msra.mxu0 %v500
    %642 = vmatpush.bf16.msra.mxu0 %v499
    %643 = vmatpush.bf16.msra.mxu0 %v498
    %644 = vmatpush.bf16.msra.mxu0 %v497
    %645 = vmatpush.bf16.msra.mxu0 %v496
    %646 = vmatpush.bf16.msra.mxu0 %v495
    %647 = vmatpush.bf16.msra.mxu0 %v494
    %648 = vmatpush.bf16.msra.mxu0 %v493
    %649 = vmatmul.bf16.gmra.mxu0 %v193
    %v650 = vpop.f32.mrf.mxu0
    %v651 = vadd.f32 %v638, %v650
    %v652 = vpop.f32.mrf.mxu0
    %653 = vdwg.mxu0
    %654 = vmatpush.bf16.msra.mxu0 %v508
    %655 = vmatpush.bf16.msra.mxu0 %v507
    %656 = vmatpush.bf16.msra.mxu0 %v506
    %657 = vmatpush.bf16.msra.mxu0 %v505
    %658 = vmatpush.bf16.msra.mxu0 %v504
    %659 = vmatpush.bf16.msra.mxu0 %v503
    %660 = vmatpush.bf16.msra.mxu0 %v502
    %661 = vmatpush.bf16.msra.mxu0 %v501
    %662 = vmatmul.bf16.gmra.mxu0 %v194
    %v663 = vpop.f32.mrf.mxu0
    %v664 = vadd.f32 %v651, %v663
    %v665 = vpop.f32.mrf.mxu0
    %666 = vdwg.mxu0
    %667 = vmatpush.bf16.msra.mxu0 %v516
    %668 = vmatpush.bf16.msra.mxu0 %v515
    %669 = vmatpush.bf16.msra.mxu0 %v514
    %670 = vmatpush.bf16.msra.mxu0 %v513
    %671 = vmatpush.bf16.msra.mxu0 %v512
    %672 = vmatpush.bf16.msra.mxu0 %v511
    %673 = vmatpush.bf16.msra.mxu0 %v510
    %674 = vmatpush.bf16.msra.mxu0 %v509
    %675 = vmatmul.bf16.gmra.mxu0 %v195
    %v676 = vpop.f32.mrf.mxu0
    %v677 = vadd.f32 %v664, %v676
    %v678 = vpop.f32.mrf.mxu0
    %679 = vdwg.mxu0
    %680 = vmatpush.bf16.msra.mxu0 %v524
    %681 = vmatpush.bf16.msra.mxu0 %v523
    %682 = vmatpush.bf16.msra.mxu0 %v522
    %683 = vmatpush.bf16.msra.mxu0 %v521
    %684 = vmatpush.bf16.msra.mxu0 %v520
    %685 = vmatpush.bf16.msra.mxu0 %v519
    %686 = vmatpush.bf16.msra.mxu0 %v518
    %687 = vmatpush.bf16.msra.mxu0 %v517
    %688 = vmatmul.bf16.gmra.mxu0 %v196
    %v689 = vpop.f32.mrf.mxu0
    %v690 = vadd.f32 %v677, %v689
    %v691 = vpop.f32.mrf.mxu0
    %692 = vdwg.mxu0
    %v693 = vadd.f32 %v57, %v690
    %694 = vst [vmem:[%s2] sm:$0x3] %v693
    // Predicated region
    $region18: #{random_forest_forward.1} parent=1 // pred_check
      _
    $region19: #{random_forest_forward.1} parent=1 // pred_check_branch
      %696 = sbr.rel (0) target = $region21
    $region20: #{random_forest_forward.1} parent=1 // pred_region
      _
    $region21: #{random_forest_forward.1} parent=1 // pred_fallthru
      _
    // Predicated region
    $region22: #{random_forest_forward.1} parent=1 // pred_check
      _
    $region23: #{random_forest_forward.1} parent=1 // pred_check_branch
      %698 = sbr.rel (0) target = $region25
    $region24: #{random_forest_forward.1} parent=1 // pred_region
      _
    $region25: #{random_forest_forward.1} parent=1 // pred_fallthru
      _
    %699 = vsyncpa [#allocation3], 1

</llo_original>
